<compile_context>
chip_gen: v7x
topology: tpu7x:2x2x1
jax: 0.10.0
libtpu: 0.0.40
codegen_flags: <defaults>
</compile_context>

<pallas_src>
import functools

import numpy as np
import jax
import jax.numpy as jnp
from jax.experimental import pallas as pl
from jax.experimental.pallas import tpu as pltpu

LANES = 128            # vreg lane width
SUBLANES_BF16 = 16     # bf16 sublane packing (one bf16 vreg holds [16, 128])
VMEM_TILE_BUDGET = 28 * 1024 * 1024   # bytes budgeted for blocks + intermediates
VMEM_LIMIT_BYTES = 48 * 1024 * 1024   # scoped VMEM ask (ok on v5e/v6e 128 MiB, v7x 64 MiB)


def _round_up(n, m):
    return ((n + m - 1) // m) * m


def qmem_kernel(x_ref, w_ry_ref, b_ry_ref, w_dec_ref, b_dec_ref, o_ref):
    # Encoding linear, RY-angle half only (RZ angles never affect measurement probs).
    # bf16 MXU operands, f32 accumulation.
    enc = jnp.dot(x_ref[...], w_ry_ref[...], preferred_element_type=jnp.float32)
    enc = enc + b_ry_ref[...]                           # (TB, NQP) + (1, NQP)
    # angle = enc * pi ;  RY(angle)|0>  =>  P(1) = sin^2(angle / 2).
    # Elementwise math kept in f32 (no bf16 VPU/EUP on v5e).
    s = jnp.sin(enc * (0.5 * np.pi))
    p1 = s * s                                          # (TB, NQP) exact Born probabilities
    # Decoding linear (bf16 MXU operands, f32 accumulation).
    out = jnp.dot(p1.astype(w_dec_ref.dtype), w_dec_ref[...],
                  preferred_element_type=jnp.float32)
    # bf16 writeback: halves output HBM traffic; precision is already bf16-limited.
    o_ref[...] = (out + b_dec_ref[...]).astype(o_ref.dtype)


def prepare_qmem_params(w_enc, b_enc, w_dec, b_dec):
    """One-time (model-init) re-layout: strided slice, lane-dense pad, transpose, bf16 cast.

    torch layout in:  w_enc (2NQ, H), b_enc (2NQ,), w_dec (H, NQ), b_dec (H,).
    Returns (w_ry_p (H_pad, NQ_pad) bf16, b_ry_p (1, NQ_pad) f32,
             w_dec_p (NQ_pad, H_pad) bf16, b_dec_p (1, H_pad) f32).
    """
    H = w_enc.shape[1]
    NQ = w_dec.shape[1]
    H_pad = _round_up(H, LANES)
    NQ_pad = _round_up(NQ, LANES)
    w_ry = w_enc[0::2, :]                               # (NQ, H)  RY rows only
    b_ry = b_enc[0::2]                                  # (NQ,)
    w_ry_p = jnp.pad(w_ry, ((0, NQ_pad - NQ), (0, H_pad - H))).T.astype(jnp.bfloat16)
    b_ry_p = jnp.pad(b_ry, (0, NQ_pad - NQ)).reshape(1, NQ_pad).astype(jnp.float32)
    w_dec_p = jnp.pad(w_dec, ((0, H_pad - H), (0, NQ_pad - NQ))).T.astype(jnp.bfloat16)
    b_dec_p = jnp.pad(b_dec, (0, H_pad - H)).reshape(1, H_pad).astype(jnp.float32)
    return (w_ry_p, b_ry_p, w_dec_p, b_dec_p)


@functools.partial(jax.jit, static_argnames=("memory_depth",))
def quantum_memory_cell_forward(x, slot_indices, prepared_params, *, memory_depth):
    """x: (B, H) float32; slot_indices: (B,) int32 in [0, memory_depth);
    prepared_params: output of prepare_qmem_params (precomputed once at init)."""
    B, H = x.shape
    w_ry_p, b_ry_p, w_dec_p, b_dec_p = prepared_params
    H_pad, NQ_pad = w_ry_p.shape

    # --- slot aliasing: last writer to a slot wins.  O(B + depth), deterministic
    #     (scatter-max is commutative).
    # Precondition (documented, matches the torch module's explicit range check):
    # slot_indices must lie in [0, memory_depth); out-of-range indices are silently
    # dropped by the scatter under jit and would select the wrong effective writer.
    iota = jnp.arange(B, dtype=jnp.int32)
    slot_last = jnp.full((memory_depth,), -1, dtype=jnp.int32).at[slot_indices].max(iota)
    eff_idx = slot_last[slot_indices]                   # (B,) index of effective writer

    # --- batch tiling sized against a VMEM budget that counts everything -----------
    weight_bytes = 2 * (w_ry_p.size * 2 + w_dec_p.size * 2      # 2 pipeline buffers each
                        + b_ry_p.size * 4 + b_dec_p.size * 4)   # (invariant blocks; could
                                                                # be Buffered(1), budget 2)
    per_row_bytes = (2 * H_pad * 2        # x tile, bf16, double-buffered
                     + 2 * H_pad * 2      # out tile, bf16, double-buffered
                     + H_pad * 4          # f32 decode accumulator before bf16 cast
                     + NQ_pad * 4         # enc (f32)
                     + NQ_pad * 2)        # p1 (bf16)
    stream_budget = max(0, VMEM_TILE_BUDGET - weight_bytes)
    tb_cap = max(SUBLANES_BF16,
                 (stream_budget // per_row_bytes) // SUBLANES_BF16 * SUBLANES_BF16)
    TB = min(_round_up(B, SUBLANES_BF16), 1024, tb_cap)
    # v7x has 2 TensorCores: keep >= 2 grid steps on the "parallel" axis when B allows,
    # so megacore sharding has something to shard.
    if B > SUBLANES_BF16:
        TB = max(SUBLANES_BF16, min(TB, _round_up((B + 1) // 2, SUBLANES_BF16)))
    B_pad = _round_up(B, TB)

    # --- gather + pad + bf16 cast of x: one fused XLA pass over x --------------------
    x_eff = jnp.take(x, eff_idx, axis=0)
    x_p = jnp.pad(x_eff, ((0, B_pad - B), (0, H_pad - H))).astype(jnp.bfloat16)

    grid = (B_pad // TB,)

    flops = 4 * B_pad * H_pad * NQ_pad + 6 * B_pad * NQ_pad
    bytes_accessed = (B_pad * H_pad * 2        # x in (bf16)
                      + B_pad * H_pad * 2      # out (bf16)
                      + w_ry_p.size * 2 + w_dec_p.size * 2
                      + b_ry_p.size * 4 + b_dec_p.size * 4)
    cost = pl.CostEstimate(flops=int(flops),
                           transcendentals=int(B_pad * NQ_pad),
                           bytes_accessed=int(bytes_accessed))

    out_p = pl.pallas_call(
        qmem_kernel,
        out_shape=jax.ShapeDtypeStruct((B_pad, H_pad), jnp.bfloat16),
        grid=grid,
        in_specs=[
            pl.BlockSpec((TB, H_pad), lambda i: (i, 0)),        # x tile (pipelined)
            pl.BlockSpec((H_pad, NQ_pad), lambda i: (0, 0)),    # encoding weight (resident)
            pl.BlockSpec((1, NQ_pad), lambda i: (0, 0)),        # encoding bias (resident)
            pl.BlockSpec((NQ_pad, H_pad), lambda i: (0, 0)),    # decoding weight (resident)
            pl.BlockSpec((1, H_pad), lambda i: (0, 0)),         # decoding bias (resident)
        ],
        out_specs=pl.BlockSpec((TB, H_pad), lambda i: (i, 0)),  # lane-dense, unmasked vst
        compiler_params=pltpu.CompilerParams(
            dimension_semantics=("parallel",),
            vmem_limit_bytes=VMEM_LIMIT_BYTES,
        ),
        cost_estimate=cost,
    )(x_p, w_ry_p, b_ry_p, w_dec_p, b_dec_p)

    return out_p[:B, :H].astype(x.dtype)


if __name__ == "__main__":
    B, H, NQ, DEPTH = 4, 32, 4, 8   # batch, classical_hidden_size, num_qubits, memory_depth

    key = jax.random.PRNGKey(0)
    k1, k2, k3, k4, k5 = jax.random.split(key, 5)

    # Deterministic nn.Linear-style init: U(-1/sqrt(fan_in), 1/sqrt(fan_in)).
    bound_enc = 1.0 / np.sqrt(H)
    w_enc = jax.random.uniform(k1, (2 * NQ, H), jnp.float32, -bound_enc, bound_enc)
    b_enc = jax.random.uniform(k2, (2 * NQ,), jnp.float32, -bound_enc, bound_enc)
    bound_dec = 1.0 / np.sqrt(NQ)
    w_dec = jax.random.uniform(k3, (H, NQ), jnp.float32, -bound_dec, bound_dec)
    b_dec = jax.random.uniform(k4, (H,), jnp.float32, -bound_dec, bound_dec)

    x = jax.random.normal(k5, (B, H), jnp.float32)
    slots = jnp.array([1, 3, 1, 5], dtype=jnp.int32)   # slot 1 written twice: item 2 wins

    # One-time weight re-layout (model init), kept off the per-forward path.
    prepared = jax.tree_util.tree_map(jax.block_until_ready,
                                      prepare_qmem_params(w_enc, b_enc, w_dec, b_dec))

    out = quantum_memory_cell_forward(x, slots, prepared, memory_depth=DEPTH)
    out = jax.block_until_ready(out)

    # Pure-JAX reference of the same write->read math, mirroring the kernel's bf16
    # matmul operands / bf16 writeback (f32 elementwise & accumulation),
    # O(B^2) last-writer aliasing as the oracle.
    same_slot = slots[:, None] == slots[None, :]
    eff_ref = jnp.max(jnp.where(same_slot, jnp.arange(B)[None, :], -1), axis=1)
    xq = x[eff_ref].astype(jnp.bfloat16).astype(jnp.float32)
    wq_enc = w_enc.astype(jnp.bfloat16).astype(jnp.float32)
    wq_dec = w_dec.astype(jnp.bfloat16).astype(jnp.float32)
    enc_ref = xq @ wq_enc.T + b_enc
    probs_ref = jnp.sin(enc_ref[:, 0::2] * (np.pi / 2.0)) ** 2
    out_ref = probs_ref.astype(jnp.bfloat16).astype(jnp.float32) @ wq_dec.T + b_dec
    out_ref = out_ref.astype(jnp.bfloat16).astype(jnp.float32)   # mimic bf16 writeback

    np.testing.assert_allclose(np.asarray(out), np.asarray(out_ref), rtol=1e-2, atol=1e-2)
    assert out.shape == (B, H)
    print("KERNEL_OK")
</pallas_src>

<mosaic_0001>
module attributes {stable_mosaic.version = 11 : i64} {
  func.func @qmem_kernel(%arg0: i32, %arg1: memref<16x128xbf16, #tpu.memory_space<vmem>>, %arg2: memref<128x128xbf16, #tpu.memory_space<vmem>>, %arg3: memref<1x128xf32, #tpu.memory_space<vmem>>, %arg4: memref<128x128xbf16, #tpu.memory_space<vmem>>, %arg5: memref<1x128xf32, #tpu.memory_space<vmem>>, %arg6: memref<16x128xbf16, #tpu.memory_space<vmem>>) attributes {dimension_semantics = [#tpu.dimension_semantics<parallel>], iteration_bounds = array<i64: 1>, scalar_prefetch = 0 : i64, scratch_operands = 0 : i64, tpu.core_type = #tpu.core_type<tc>, window_params = [{transform_indices = @transform_0, window_bounds = array<i64: 16, 128>}, {pipeline_mode = #tpu.pipeline_mode<synchronous>, transform_indices = @transform_1, window_bounds = array<i64: 128, 128>}, {pipeline_mode = #tpu.pipeline_mode<synchronous>, transform_indices = @transform_2, window_bounds = array<i64: 1, 128>}, {pipeline_mode = #tpu.pipeline_mode<synchronous>, transform_indices = @transform_3, window_bounds = array<i64: 128, 128>}, {pipeline_mode = #tpu.pipeline_mode<synchronous>, transform_indices = @transform_4, window_bounds = array<i64: 1, 128>}, {transform_indices = @transform_5, window_bounds = array<i64: 16, 128>}]} {
    %c0 = arith.constant 0 : index
    %c0_0 = arith.constant 0 : index
    %0 = vector.load %arg1[%c0, %c0_0] : memref<16x128xbf16, #tpu.memory_space<vmem>>, vector<16x128xbf16>
    %c0_1 = arith.constant 0 : index
    %c0_2 = arith.constant 0 : index
    %1 = vector.load %arg2[%c0_1, %c0_2] : memref<128x128xbf16, #tpu.memory_space<vmem>>, vector<128x128xbf16>
    %cst = arith.constant dense<0.000000e+00> : vector<16x128xf32>
    %2 = tpu.matmul %0, %1, %cst {dimension_numbers = #tpu.dot_dimension_numbers<[1], [0], [0], [1], [0, 0, 1, 1], [], []>} : vector<16x128xbf16>, vector<128x128xbf16>, vector<16x128xf32> -> vector<16x128xf32>
    %c0_3 = arith.constant 0 : index
    %c0_4 = arith.constant 0 : index
    %3 = vector.load %arg3[%c0_3, %c0_4] : memref<1x128xf32, #tpu.memory_space<vmem>>, vector<1x128xf32>
    %4 = vector.broadcast %3 : vector<1x128xf32> to vector<16x128xf32>
    %5 = arith.addf %2, %4 : vector<16x128xf32>
    %cst_5 = arith.constant 1.57079637 : f32
    %6 = vector.broadcast %cst_5 : f32 to vector<16x128xf32>
    %7 = arith.mulf %5, %6 : vector<16x128xf32>
    %8 = math.sin %7 : vector<16x128xf32>
    %9 = arith.mulf %8, %8 : vector<16x128xf32>
    %10 = arith.truncf %9 : vector<16x128xf32> to vector<16x128xbf16>
    %c0_6 = arith.constant 0 : index
    %c0_7 = arith.constant 0 : index
    %11 = vector.load %arg4[%c0_6, %c0_7] : memref<128x128xbf16, #tpu.memory_space<vmem>>, vector<128x128xbf16>
    %cst_8 = arith.constant dense<0.000000e+00> : vector<16x128xf32>
    %12 = tpu.matmul %10, %11, %cst_8 {dimension_numbers = #tpu.dot_dimension_numbers<[1], [0], [0], [1], [0, 0, 1, 1], [], []>} : vector<16x128xbf16>, vector<128x128xbf16>, vector<16x128xf32> -> vector<16x128xf32>
    %c0_9 = arith.constant 0 : index
    %c0_10 = arith.constant 0 : index
    %13 = vector.load %arg5[%c0_9, %c0_10] : memref<1x128xf32, #tpu.memory_space<vmem>>, vector<1x128xf32>
    %14 = vector.broadcast %13 : vector<1x128xf32> to vector<16x128xf32>
    %15 = arith.addf %12, %14 : vector<16x128xf32>
    %16 = arith.truncf %15 : vector<16x128xf32> to vector<16x128xbf16>
    %c0_11 = arith.constant 0 : index
    %c0_12 = arith.constant 0 : index
    %17 = vector.load %arg6[%c0_11, %c0_12] : memref<16x128xbf16, #tpu.memory_space<vmem>>, vector<16x128xbf16>
    tpu.vector_store %arg6[%c0_11, %c0_12], %16 {strides = array<i32>} : memref<16x128xbf16, #tpu.memory_space<vmem>>, vector<16x128xbf16>,
    return
  }
  func.func @transform_0(%arg0: i32) -> (i32, i32) {
    %c0_i32 = arith.constant 0 : i32
    %c0_i32_0 = arith.constant 0 : i32
    return %arg0, %c0_i32 : i32, i32
  }
  func.func @transform_1(%arg0: i32) -> (i32, i32) {
    %c0_i32 = arith.constant 0 : i32
    %c0_i32_0 = arith.constant 0 : i32
    %c0_i32_1 = arith.constant 0 : i32
    return %c0_i32, %c0_i32_0 : i32, i32
  }
  func.func @transform_2(%arg0: i32) -> (i32, i32) {
    %c0_i32 = arith.constant 0 : i32
    %c0_i32_0 = arith.constant 0 : i32
    %c0_i32_1 = arith.constant 0 : i32
    return %c0_i32, %c0_i32_0 : i32, i32
  }
  func.func @transform_3(%arg0: i32) -> (i32, i32) {
    %c0_i32 = arith.constant 0 : i32
    %c0_i32_0 = arith.constant 0 : i32
    %c0_i32_1 = arith.constant 0 : i32
    return %c0_i32, %c0_i32_0 : i32, i32
  }
  func.func @transform_4(%arg0: i32) -> (i32, i32) {
    %c0_i32 = arith.constant 0 : i32
    %c0_i32_0 = arith.constant 0 : i32
    %c0_i32_1 = arith.constant 0 : i32
    return %c0_i32, %c0_i32_0 : i32, i32
  }
  func.func @transform_5(%arg0: i32) -> (i32, i32) {
    %c0_i32 = arith.constant 0 : i32
    %c0_i32_0 = arith.constant 0 : i32
    return %arg0, %c0_i32 : i32, i32
  }
}

</mosaic_0001>

<llo_original>
// kernel: quantum_memory_cell_forward.1
$region0: #{quantum_memory_cell_forward.1}
  #allocation0 [shape = 'u32[]', space=smem, size = 0x4, offset = 0x4, fixed_abs, tag = 'smem constant byte address 0x4 - core index']
  #allocation1 [shape = 'u32[144,128]{1,0:T(1,128)}', space=vmem, size = 0x12000, scoped, tag = 'internal scratch']
  %s0 = inlined_call_operand.vmem [shape: bf16[16,128], index: 0, kind: input, shape index: {}]
  %s1 = inlined_call_operand.vmem [shape: bf16[128,128], index: 1, kind: input, shape index: {}]
  %s2 = inlined_call_operand.vmem [shape: f32[1,128], index: 2, kind: input, shape index: {}]
  %s3 = inlined_call_operand.vmem [shape: bf16[128,128], index: 3, kind: input, shape index: {}]
  %s4 = inlined_call_operand.vmem [shape: f32[1,128], index: 4, kind: input, shape index: {}]
  %s5 = inlined_call_operand.vmem [shape: bf16[16,128], index: 5, kind: output, shape index: {}]
  %s6 = sld [smem:[#allocation0]]
  $region30: #{quantum_memory_cell_forward.1} parent=0
    _
  %s8 = ssub.s32 1, %s6
  %s9 = scalar_select 0, %s8, %s6
  // Predicated region
  $region2: #{quantum_memory_cell_forward.1} parent=0 // pred_check
    _
  $region3: #{quantum_memory_cell_forward.1} parent=0 // pred_check_branch
    %11 = sbr.rel (0) target = $region5
  $region4: #{quantum_memory_cell_forward.1} parent=0 // pred_region
    _
  $region5: #{quantum_memory_cell_forward.1} parent=0 // pred_fallthru
    _
  // Predicated region
  $region6: #{quantum_memory_cell_forward.1} parent=0 // pred_check
    _
  $region7: #{quantum_memory_cell_forward.1} parent=0 // pred_check_branch
    %13 = sbr.rel (0) target = $region9
  $region8: #{quantum_memory_cell_forward.1} parent=0 // pred_region
    _
  $region9: #{quantum_memory_cell_forward.1} parent=0 // pred_fallthru
    _
  // Predicated region
  $region10: #{quantum_memory_cell_forward.1} parent=0 // pred_check
    _
  $region11: #{quantum_memory_cell_forward.1} parent=0 // pred_check_branch
    %15 = sbr.rel (0) target = $region13
  $region12: #{quantum_memory_cell_forward.1} parent=0 // pred_region
    _
  $region13: #{quantum_memory_cell_forward.1} parent=0 // pred_fallthru
    _
  // Predicated region
  $region14: #{quantum_memory_cell_forward.1} parent=0 // pred_check
    _
  $region15: #{quantum_memory_cell_forward.1} parent=0 // pred_check_branch
    %17 = sbr.rel (0) target = $region17
  $region16: #{quantum_memory_cell_forward.1} parent=0 // pred_region
    _
  $region17: #{quantum_memory_cell_forward.1} parent=0 // pred_fallthru
    _
  // Predicated region
  $region18: #{quantum_memory_cell_forward.1} parent=0 // pred_check
    _
  $region19: #{quantum_memory_cell_forward.1} parent=0 // pred_check_branch
    %19 = sbr.rel (0) target = $region21
  $region20: #{quantum_memory_cell_forward.1} parent=0 // pred_region
    _
  $region21: #{quantum_memory_cell_forward.1} parent=0 // pred_fallthru
    _
  %v21 = vld [vmem:[%s0] sm:$0xf]
  %v22 = vld [vmem:[%s0 + $0x4] sm:$0xf]
  %v23 = vld [vmem:[%s1] sm:$0xf]
  %v24 = vld [vmem:[%s1 + $0x4] sm:$0xf]
  %v25 = vld [vmem:[%s1 + $0x8] sm:$0xf]
  %v26 = vld [vmem:[%s1 + $0xc] sm:$0xf]
  %v27 = vld [vmem:[%s1 + $0x10] sm:$0xf]
  %v28 = vld [vmem:[%s1 + $0x14] sm:$0xf]
  %v29 = vld [vmem:[%s1 + $0x18] sm:$0xf]
  %v30 = vld [vmem:[%s1 + $0x1c] sm:$0xf]
  %v31 = vld [vmem:[%s1 + $0x20] sm:$0xf]
  %v32 = vld [vmem:[%s1 + $0x24] sm:$0xf]
  %v33 = vld [vmem:[%s1 + $0x28] sm:$0xf]
  %v34 = vld [vmem:[%s1 + $0x2c] sm:$0xf]
  %v35 = vld [vmem:[%s1 + $0x30] sm:$0xf]
  %v36 = vld [vmem:[%s1 + $0x34] sm:$0xf]
  %v37 = vld [vmem:[%s1 + $0x38] sm:$0xf]
  %v38 = vld [vmem:[%s1 + $0x3c] sm:$0xf]
  %v39 = vld [vmem:[%s2] sm:$0x1]
  %v41 = vlaneseq
  %v42 = vshrl.u32 %v41, 7
  %v43 = vsub.s32 0, %v42
  %v44 = vrot.slane %v39, %v43
  %v48 = vunpack.c.l.b16 %v21
  %v49 = vunpack.c.l.b16 %v22
  %v50 = vpack.c.b16 %v49, %v48
  %v68 = vunpack.c.l.b16 %v23
  %v69 = vunpack.c.l.b16 %v24
  %v70 = vunpack.c.l.b16 %v25
  %v71 = vunpack.c.l.b16 %v26
  %v72 = vunpack.c.l.b16 %v27
  %v73 = vunpack.c.l.b16 %v28
  %v74 = vunpack.c.l.b16 %v29
  %v75 = vunpack.c.l.b16 %v30
  %v76 = vunpack.c.l.b16 %v31
  %v77 = vunpack.c.l.b16 %v32
  %v78 = vunpack.c.l.b16 %v33
  %v79 = vunpack.c.l.b16 %v34
  %v80 = vunpack.c.l.b16 %v35
  %v81 = vunpack.c.l.b16 %v36
  %v82 = vunpack.c.l.b16 %v37
  %v83 = vunpack.c.l.b16 %v38
  %v84 = vpack.c.b16 %v69, %v68
  %v85 = vpack.c.b16 %v71, %v70
  %v86 = vpack.c.b16 %v73, %v72
  %v87 = vpack.c.b16 %v75, %v74
  %v88 = vpack.c.b16 %v77, %v76
  %v89 = vpack.c.b16 %v79, %v78
  %v90 = vpack.c.b16 %v81, %v80
  %v91 = vpack.c.b16 %v83, %v82
  %100 = vmatprep.subr.bf16.mxu0 0
  %101 = vmatpush1.bf16.msra.mxu0 %v84
  %102 = vmatprep.subr.bf16.mxu0 0
  %103 = vmatpush1.bf16.msra.mxu0 %v85
  %104 = vmatprep.subr.bf16.mxu0 0
  %105 = vmatpush1.bf16.msra.mxu0 %v86
  %106 = vmatprep.subr.bf16.mxu0 0
  %107 = vmatpush1.bf16.msra.mxu0 %v87
  %108 = vmatprep.subr.bf16.mxu0 0
  %109 = vmatpush1.bf16.msra.mxu0 %v88
  %110 = vmatprep.subr.bf16.mxu0 0
  %111 = vmatpush1.bf16.msra.mxu0 %v89
  %112 = vmatprep.subr.bf16.mxu0 0
  %113 = vmatpush1.bf16.msra.mxu0 %v90
  %114 = vmatprep.subr.bf16.mxu0 0
  %115 = vmatpush1.bf16.msra.mxu0 %v91
  %116 = vmatprep.subr.bf16.mxu0 0
  %117 = vmatpush1.bf16.msra.mxu0 0
  %118 = vmatprep.subr.bf16.mxu0 0
  %119 = vmatpush1.bf16.msra.mxu0 0
  %120 = vmatprep.subr.bf16.mxu0 0
  %121 = vmatpush1.bf16.msra.mxu0 0
  %122 = vmatprep.subr.bf16.mxu0 0
  %123 = vmatpush1.bf16.msra.mxu0 0
  %124 = vmatprep.subr.bf16.mxu0 0
  %125 = vmatpush1.bf16.msra.mxu0 0
  %126 = vmatprep.subr.bf16.mxu0 0
  %127 = vmatpush1.bf16.msra.mxu0 0
  %128 = vmatprep.subr.bf16.mxu0 0
  %129 = vmatpush1.bf16.msra.mxu0 0
  %130 = vmatprep.subr.bf16.mxu0 0
  %131 = vmatpush1.bf16.msra.mxu0 0
  %132 = vmatprep.mubr.bf16.mxu0 0
  %133 = vmatmul.mubr.bf16.gmra.mrb[0].mxu0 %v50
  %v134 = vpop.f32.mrb[0].mxu0
  %v135 = vadd.f32 %v44, %v134
  %v136 = vpop.f32.mrb[0].mxu0
  %v137 = vpop.f32.mrb[0].mxu0
  %v138 = vadd.f32 %v44, %v137
  %v139 = vpop.f32.mrb[0].mxu0
  %140 = vdwg.mxu0
  %v141 = vmul.f32 %v135, 1.5707964
  %v142 = vmul.f32 %v138, 1.5707964
  %v143 = vand.u32 2147483647, %v141
  %vm144 = vcmp.le.f32.partialorder %v143, 0.7853982
  %vm145 = vcmp.lt.s32.totalorder %v141, 0
  %v146 = vand.u32 %v141, 2139095040
  %v147 = vshrl.u32 %v146, 23
  %v148 = vsub.s32 %v147, 127
  %v149 = vand.u32 2147483647, %v141
  %v150 = vand.u32 %v149, 8388607
  %v151 = vor.u32 %v150, 8388608
  %v152 = vsub.s32 0, %v151
  %v153 = vadd.s32 %v148, 1
  %vm154 = vcmp.gt.s32.totalorder %v153, 0
  %v155 = vsel %vm154, %v153, 0
  %v156 = vshrl.u32 %v155, 5
  %v157 = vand.u32 %v155, 31
  %v158 = vsub.s32 32, %v157
  %v159 = vshrl.u32 683565275, %v158
  %v160 = vshll.u32 683565275, %v157
  %v161 = vshrl.u32 2475754826, %v158
  %v162 = vor.u32 %v160, %v161
  %v163 = vshll.u32 2475754826, %v157
  %v164 = vshrl.u32 2131351028, %v158
  %v165 = vor.u32 %v163, %v164
  %v166 = vshll.u32 2131351028, %v157
  %v167 = vshrl.u32 2102212464, %v158
  %v168 = vor.u32 %v166, %v167
  %v169 = vshll.u32 2102212464, %v157
  %v170 = vshrl.u32 920167782, %v158
  %v171 = vor.u32 %v169, %v170
  %v172 = vshll.u32 920167782, %v157
  %v173 = vshrl.u32 1326507024, %v158
  %v174 = vor.u32 %v172, %v173
  %vm175 = vcmp.lt.s32.totalorder %v156, 1
  %vm176 = vcmp.lt.s32.totalorder %v156, 2
  %vm177 = vcmp.lt.s32.totalorder %v156, 3
  %vm178 = vcmp.lt.s32.totalorder %v156, 4
  %v179 = vsel %vm175, %v159, %v162
  %v180 = vsel %vm178, %v168, 2102212464
  %v181 = vsel %vm177, %v165, %v180
  %v182 = vsel %vm176, %v179, %v181
  %v183 = vsel %vm175, %v162, %v165
  %v184 = vsel %vm178, %v171, 920167782
  %v185 = vsel %vm177, %v168, %v184
  %v186 = vsel %vm176, %v183, %v185
  %v187 = vsel %vm175, %v165, %v168
  %v188 = vsel %vm178, %v174, 1326507024
  %v189 = vsel %vm177, %v171, %v188
  %v190 = vsel %vm176, %v187, %v189
  %v191 = vshll.u32 %v151, 8
  %v192 = vmul.u32.u64.compose %v191, %v190
  %v193 = vextract.low.u32 %v192
  %v194 = vextract.high.u32 %v192
  %v195 = vmul.u32.u64.compose %v191, %v186
  %v196 = vextract.low.u32 %v195
  %v197 = vextract.high.u32 %v195
  %v198 = vmul.u32 %v191, %v182
  %v199 = vadd.s32 %v194, %v196
  %vm200 = vc.u32 %v194, %v196
  %v201 = vadd.s32 %v197, 1
  %v202 = vsel %vm200, %v201, %v197
  %v203 = vadd.s32 %v198, %v202
  %v204 = vadd.s32 %v203, 536870912
  %v205 = vshrl.u32 %v204, 30
  %v206 = vshll.u32 %v205, 30
  %v207 = vsub.s32 %v203, %v206
  %vm208 = vcmp.lt.s32.totalorder %v207, 0
  %v209 = vsub.s32 0, %v207
  %v210 = vsel %vm208, %v209, %v207
  %v211 = vclz %v210
  %v212 = vsub.s32 %v211, 2
  %vm213 = vcmp.gt.s32.totalorder 0, %v212
  %v214 = vsel %vm213, 0, %v212
  %v215 = vsub.s32 32, %v214
  %v216 = vshll.u32 %v207, %v214
  %v217 = vshrl.u32 %v199, %v215
  %v218 = vor.u32 %v216, %v217
  %v219 = vsub.s32 4294967266, %v214
  %v220 = vadd.s32 %v219, 127
  %v221 = vshll.u32 %v220, 23
  %v222 = vor.u32 4788187, %v221
  %v223 = vand.u32 2147483647, %v222
  %v225 = vcvt.s32.f32 %v218
  %v226 = vmul.f32 %v225, %v223
  %v227 = vxor.u32 %v226, 2147483648
  %v228 = vsel %vm145, %v227, %v226
  %v229 = vsub.s32 4, %v205
  %v230 = vsel %vm145, %v229, %v205
  %v231 = vsel %vm144, %v141, %v228
  %v232 = vsel %vm144, 0, %v230
  %v233 = vcosq.f32.pop %v231
  %v234 = vsinq.f32.pop %v231
  %vm235 = vweird.f32 %v141
  %v236 = vadd.s32 %v232, 3
  %v237 = vand.u32 %v236, 3
  %vm238 = vcmp.lt.s32.totalorder %v237, 2
  %vm239 = vcmp.eq.s32.totalorder %v237, 0
  %v240 = vxor.u32 %v234, 2147483648
  %v241 = vsel %vm239, %v233, %v240
  %vm242 = vcmp.eq.s32.totalorder %v237, 2
  %v243 = vxor.u32 %v233, 2147483648
  %v244 = vsel %vm242, %v243, %v234
  %v245 = vsel %vm238, %v241, %v244
  %v246 = vsel %vm235, nan, %v245
  %v247 = vand.u32 2147483647, %v142
  %vm248 = vcmp.le.f32.partialorder %v247, 0.7853982
  %vm249 = vcmp.lt.s32.totalorder %v142, 0
  %v250 = vand.u32 %v142, 2139095040
  %v251 = vshrl.u32 %v250, 23
  %v252 = vsub.s32 %v251, 127
  %v253 = vand.u32 2147483647, %v142
  %v254 = vand.u32 %v253, 8388607
  %v255 = vor.u32 %v254, 8388608
  %v256 = vsub.s32 0, %v255
  %v257 = vadd.s32 %v252, 1
  %vm258 = vcmp.gt.s32.totalorder %v257, 0
  %v259 = vsel %vm258, %v257, 0
  %v260 = vshrl.u32 %v259, 5
  %v261 = vand.u32 %v259, 31
  %v262 = vsub.s32 32, %v261
  %v263 = vshrl.u32 683565275, %v262
  %v264 = vshll.u32 683565275, %v261
  %v265 = vshrl.u32 2475754826, %v262
  %v266 = vor.u32 %v264, %v265
  %v267 = vshll.u32 2475754826, %v261
  %v268 = vshrl.u32 2131351028, %v262
  %v269 = vor.u32 %v267, %v268
  %v270 = vshll.u32 2131351028, %v261
  %v271 = vshrl.u32 2102212464, %v262
  %v272 = vor.u32 %v270, %v271
  %v273 = vshll.u32 2102212464, %v261
  %v274 = vshrl.u32 920167782, %v262
  %v275 = vor.u32 %v273, %v274
  %v276 = vshll.u32 920167782, %v261
  %v277 = vshrl.u32 1326507024, %v262
  %v278 = vor.u32 %v276, %v277
  %vm279 = vcmp.lt.s32.totalorder %v260, 1
  %vm280 = vcmp.lt.s32.totalorder %v260, 2
  %vm281 = vcmp.lt.s32.totalorder %v260, 3
  %vm282 = vcmp.lt.s32.totalorder %v260, 4
  %v283 = vsel %vm279, %v263, %v266
  %v284 = vsel %vm282, %v272, 2102212464
  %v285 = vsel %vm281, %v269, %v284
  %v286 = vsel %vm280, %v283, %v285
  %v287 = vsel %vm279, %v266, %v269
  %v288 = vsel %vm282, %v275, 920167782
  %v289 = vsel %vm281, %v272, %v288
  %v290 = vsel %vm280, %v287, %v289
  %v291 = vsel %vm279, %v269, %v272
  %v292 = vsel %vm282, %v278, 1326507024
  %v293 = vsel %vm281, %v275, %v292
  %v294 = vsel %vm280, %v291, %v293
  %v295 = vshll.u32 %v255, 8
  %v296 = vmul.u32.u64.compose %v295, %v294
  %v297 = vextract.low.u32 %v296
  %v298 = vextract.high.u32 %v296
  %v299 = vmul.u32.u64.compose %v295, %v290
  %v300 = vextract.low.u32 %v299
  %v301 = vextract.high.u32 %v299
  %v302 = vmul.u32 %v295, %v286
  %v303 = vadd.s32 %v298, %v300
  %vm304 = vc.u32 %v298, %v300
  %v305 = vadd.s32 %v301, 1
  %v306 = vsel %vm304, %v305, %v301
  %v307 = vadd.s32 %v302, %v306
  %v308 = vadd.s32 %v307, 536870912
  %v309 = vshrl.u32 %v308, 30
  %v310 = vshll.u32 %v309, 30
  %v311 = vsub.s32 %v307, %v310
  %vm312 = vcmp.lt.s32.totalorder %v311, 0
  %v313 = vsub.s32 0, %v311
  %v314 = vsel %vm312, %v313, %v311
  %v315 = vclz %v314
  %v316 = vsub.s32 %v315, 2
  %vm317 = vcmp.gt.s32.totalorder 0, %v316
  %v318 = vsel %vm317, 0, %v316
  %v319 = vsub.s32 32, %v318
  %v320 = vshll.u32 %v311, %v318
  %v321 = vshrl.u32 %v303, %v319
  %v322 = vor.u32 %v320, %v321
  %v323 = vsub.s32 4294967266, %v318
  %v324 = vadd.s32 %v323, 127
  %v325 = vshll.u32 %v324, 23
  %v326 = vor.u32 4788187, %v325
  %v327 = vand.u32 2147483647, %v326
  %v329 = vcvt.s32.f32 %v322
  %v330 = vmul.f32 %v329, %v327
  %v331 = vxor.u32 %v330, 2147483648
  %v332 = vsel %vm249, %v331, %v330
  %v333 = vsub.s32 4, %v309
  %v334 = vsel %vm249, %v333, %v309
  %v335 = vsel %vm248, %v142, %v332
  %v336 = vsel %vm248, 0, %v334
  %v337 = vcosq.f32.pop %v335
  %v338 = vsinq.f32.pop %v335
  %vm339 = vweird.f32 %v142
  %v340 = vadd.s32 %v336, 3
  %v341 = vand.u32 %v340, 3
  %vm342 = vcmp.lt.s32.totalorder %v341, 2
  %vm343 = vcmp.eq.s32.totalorder %v341, 0
  %v344 = vxor.u32 %v338, 2147483648
  %v345 = vsel %vm343, %v337, %v344
  %vm346 = vcmp.eq.s32.totalorder %v341, 2
  %v347 = vxor.u32 %v337, 2147483648
  %v348 = vsel %vm346, %v347, %v338
  %v349 = vsel %vm342, %v345, %v348
  %v350 = vsel %vm339, nan, %v349
  %v351 = vmul.f32 %v246, %v246
  %v352 = vmul.f32 %v350, %v350
  %v353 = vpack.c.bf16 %v352, %v351
  %v354 = vld [vmem:[%s3] sm:$0xf]
  %v355 = vld [vmem:[%s3 + $0x4] sm:$0xf]
  %v356 = vld [vmem:[%s3 + $0x8] sm:$0xf]
  %v357 = vld [vmem:[%s3 + $0xc] sm:$0xf]
  %v358 = vld [vmem:[%s3 + $0x10] sm:$0xf]
  %v359 = vld [vmem:[%s3 + $0x14] sm:$0xf]
  %v360 = vld [vmem:[%s3 + $0x18] sm:$0xf]
  %v361 = vld [vmem:[%s3 + $0x1c] sm:$0xf]
  %v362 = vld [vmem:[%s3 + $0x20] sm:$0xf]
  %v363 = vld [vmem:[%s3 + $0x24] sm:$0xf]
  %v364 = vld [vmem:[%s3 + $0x28] sm:$0xf]
  %v365 = vld [vmem:[%s3 + $0x2c] sm:$0xf]
  %v366 = vld [vmem:[%s3 + $0x30] sm:$0xf]
  %v367 = vld [vmem:[%s3 + $0x34] sm:$0xf]
  %v368 = vld [vmem:[%s3 + $0x38] sm:$0xf]
  %v369 = vld [vmem:[%s3 + $0x3c] sm:$0xf]
  %v370 = vld [vmem:[%s4] sm:$0x1]
  %v372 = vlaneseq
  %v373 = vshrl.u32 %v372, 7
  %v374 = vsub.s32 0, %v373
  %v375 = vrot.slane %v370, %v374
  %v393 = vunpack.c.l.b16 %v354
  %v394 = vunpack.c.l.b16 %v355
  %v395 = vunpack.c.l.b16 %v356
  %v396 = vunpack.c.l.b16 %v357
  %v397 = vunpack.c.l.b16 %v358
  %v398 = vunpack.c.l.b16 %v359
  %v399 = vunpack.c.l.b16 %v360
  %v400 = vunpack.c.l.b16 %v361
  %v401 = vunpack.c.l.b16 %v362
  %v402 = vunpack.c.l.b16 %v363
  %v403 = vunpack.c.l.b16 %v364
  %v404 = vunpack.c.l.b16 %v365
  %v405 = vunpack.c.l.b16 %v366
  %v406 = vunpack.c.l.b16 %v367
  %v407 = vunpack.c.l.b16 %v368
  %v408 = vunpack.c.l.b16 %v369
  %v409 = vpack.c.b16 %v394, %v393
  %v410 = vpack.c.b16 %v396, %v395
  %v411 = vpack.c.b16 %v398, %v397
  %v412 = vpack.c.b16 %v400, %v399
  %v413 = vpack.c.b16 %v402, %v401
  %v414 = vpack.c.b16 %v404, %v403
  %v415 = vpack.c.b16 %v406, %v405
  %v416 = vpack.c.b16 %v408, %v407
  %425 = vmatprep.subr.bf16.mxu0 0
  %426 = vmatpush1.bf16.msra.mxu0 %v409
  %427 = vmatprep.subr.bf16.mxu0 0
  %428 = vmatpush1.bf16.msra.mxu0 %v410
  %429 = vmatprep.subr.bf16.mxu0 0
  %430 = vmatpush1.bf16.msra.mxu0 %v411
  %431 = vmatprep.subr.bf16.mxu0 0
  %432 = vmatpush1.bf16.msra.mxu0 %v412
  %433 = vmatprep.subr.bf16.mxu0 0
  %434 = vmatpush1.bf16.msra.mxu0 %v413
  %435 = vmatprep.subr.bf16.mxu0 0
  %436 = vmatpush1.bf16.msra.mxu0 %v414
  %437 = vmatprep.subr.bf16.mxu0 0
  %438 = vmatpush1.bf16.msra.mxu0 %v415
  %439 = vmatprep.subr.bf16.mxu0 0
  %440 = vmatpush1.bf16.msra.mxu0 %v416
  %441 = vmatprep.subr.bf16.mxu0 0
  %442 = vmatpush1.bf16.msra.mxu0 0
  %443 = vmatprep.subr.bf16.mxu0 0
  %444 = vmatpush1.bf16.msra.mxu0 0
  %445 = vmatprep.subr.bf16.mxu0 0
  %446 = vmatpush1.bf16.msra.mxu0 0
  %447 = vmatprep.subr.bf16.mxu0 0
  %448 = vmatpush1.bf16.msra.mxu0 0
  %449 = vmatprep.subr.bf16.mxu0 0
  %450 = vmatpush1.bf16.msra.mxu0 0
  %451 = vmatprep.subr.bf16.mxu0 0
  %452 = vmatpush1.bf16.msra.mxu0 0
  %453 = vmatprep.subr.bf16.mxu0 0
  %454 = vmatpush1.bf16.msra.mxu0 0
  %455 = vmatprep.subr.bf16.mxu0 0
  %456 = vmatpush1.bf16.msra.mxu0 0
  %457 = vmatprep.mubr.bf16.mxu0 0
  %458 = vmatmul.mubr.bf16.gmra.mrb[0].mxu0 %v353
  %v459 = vpop.f32.mrb[0].mxu0
  %v460 = vadd.f32 %v375, %v459
  %v461 = vpop.f32.mrb[0].mxu0
  %v462 = vpop.f32.mrb[0].mxu0
  %v463 = vadd.f32 %v375, %v462
  %v464 = vpop.f32.mrb[0].mxu0
  %465 = vdwg.mxu0
  %v466 = vpack.c.bf16 %v463, %v460
  %v468 = vunpack.c.l.b16 %v466
  %v469 = vunpack.c.h.b16 %v466
  %v470 = vpack.c.b16 %v468, %v468
  %v471 = vpack.c.b16 %v469, %v469
  %474 = vst [vmem:[%s5] sm:$0xf] %v470
  %475 = vst [vmem:[%s5 + $0x4] sm:$0xf] %v471
  // Predicated region
  $region22: #{quantum_memory_cell_forward.1} parent=0 // pred_check
    _
  $region23: #{quantum_memory_cell_forward.1} parent=0 // pred_check_branch
    %477 = sbr.rel (0) target = $region25
  $region24: #{quantum_memory_cell_forward.1} parent=0 // pred_region
    _
  $region25: #{quantum_memory_cell_forward.1} parent=0 // pred_fallthru
    _
  // Predicated region
  $region26: #{quantum_memory_cell_forward.1} parent=0 // pred_check
    _
  $region27: #{quantum_memory_cell_forward.1} parent=0 // pred_check_branch
    %479 = sbr.rel (0) target = $region29
  $region28: #{quantum_memory_cell_forward.1} parent=0 // pred_region
    _
  $region29: #{quantum_memory_cell_forward.1} parent=0 // pred_fallthru
    _

</llo_original>
